<compile_context>
chip_gen: v6e
topology: v6e:2x2x1
jax: 0.10.0
libtpu: 0.0.40
codegen_flags: <defaults>
</compile_context>

<pallas_src>
import numpy as np
import jax
import jax.numpy as jnp
from jax import lax
from jax.experimental import pallas as pl
from jax.experimental.pallas import tpu as pltpu


def _pair(v):
    return (v, v) if isinstance(v, int) else tuple(v)


def _round_up(a, b):
    return (a + b - 1) // b * b


# Hamilton block layout of quaternion_transpose_conv:
#   rows = input-component blocks, cols = output-component blocks
#   [[ r, -i, -j, -k],
#    [ i,  r, -k,  j],
#    [ j,  k,  r, -i],
#    [ k, -j,  i,  r]]
# each entry is (component index in (r,i,j,k), sign).
_HAMILTON = (
    ((0, +1), (1, -1), (2, -1), (3, -1)),
    ((1, +1), (0, +1), (3, -1), (2, +1)),
    ((2, +1), (3, +1), (0, +1), (1, -1)),
    ((3, +1), (2, -1), (1, +1), (0, +1)),
)


def _qtconv_kernel(p_ref, w_ref, b_ref, o_ref):
    """One (tm, 4*P) output tile of the quaternion transposed convolution.

    p_ref : (tm, K)     bf16  fused-tap input patches for this tile, K = n_taps*Cin
    w_ref : (K, 4*P)    bf16  pre-assembled Hamilton weight (resident across grid)
    b_ref : (1, 4*P)    f32   bias, zero-padded per component block (resident)
    o_ref : (tm, 4*P)   f32   output tile (4*P % 128 == 0 -> lane-dense stores)
    """
    acc = jnp.dot(p_ref[...], w_ref[...], preferred_element_type=jnp.float32)
    o_ref[...] = (acc + b_ref[...]).astype(o_ref.dtype)


def quaternion_transpose_conv2d_pallas(x, r_w, i_w, j_w, k_w, bias, *,
                                       stride=1, padding=0, output_padding=0,
                                       dilation=1, groups=1, tm=512):
    """Forward of UnilateralQuaternionTransposeConv (rotation=False path).

    x           : (N, 4*in_q, H, W) float32, NCHW (PyTorch layout)
    r/i/j/k_w   : (in_q, out_q, kH, kW)  -- conv_transpose weight layout (in, out, kh, kw)
    bias        : (4*out_q,) or None
    """
    # TODO(synk): groups != 1, the rotation=True path and weight_init='quaternion'
    # (polar re-parameterization of the weights) are not implemented here.
    assert groups == 1, "only groups=1 is supported"

    N, Cin, H, W = x.shape
    in_q, out_q, kH, kW = r_w.shape
    assert Cin == 4 * in_q

    sH, sW = _pair(stride)
    pH, pW = _pair(padding)
    opH, opW = _pair(output_padding)
    dH, dW = _pair(dilation)

    H_out = (H - 1) * sH - 2 * pH + dH * (kH - 1) + opH + 1
    W_out = (W - 1) * sW - 2 * pW + dW * (kW - 1) + opW + 1

    # conv_transpose == stride-1 direct conv on the zero-inserted + edge-padded
    # input with the spatially flipped kernel.
    pad_lo_h = dH * (kH - 1) - pH
    pad_hi_h = pad_lo_h + opH
    pad_lo_w = dW * (kW - 1) - pW
    pad_hi_w = pad_lo_w + opW

    # NHWC, bf16 (halves HBM traffic; MXU is bf16-native), zero-insert + pad.
    x_nhwc = jnp.transpose(x, (0, 2, 3, 1)).astype(jnp.bfloat16)
    x_pad = lax.pad(x_nhwc, jnp.zeros((), jnp.bfloat16),
                    ((0, 0, 0),
                     (pad_lo_h, pad_hi_h, sH - 1),
                     (pad_lo_w, pad_hi_w, sW - 1),
                     (0, 0, 0)))

    # Fused-tap patches: (M, n_taps*Cin).  Column block t*Cin:(t+1)*Cin holds the
    # input window shifted by tap t = kh*kW + kw, so one GEMM with K = n_taps*Cin
    # replaces n_taps K=Cin dots (near-full MXU systolic depth, single result pop).
    n_taps = kH * kW
    tap_views = []
    for kh in range(kH):
        for kw_i in range(kW):
            tap_views.append(
                lax.slice(x_pad,
                          (0, kh * dH, kw_i * dW, 0),
                          (N, kh * dH + H_out, kw_i * dW + W_out, Cin)))
    K = n_taps * Cin
    M = N * H_out * W_out
    patches = jnp.concatenate(tap_views, axis=-1).reshape(M, K)

    # Tile selection: big tiles for the mem-bound roofline, but keep >= 2 grid
    # steps when M allows so the "parallel" axis occupies both v7x TensorCores.
    tm = max(8, min(tm, _round_up(-(-M // 2), 8)))
    M_pad = _round_up(M, tm)
    if M_pad != M:
        patches = jnp.pad(patches, ((0, M_pad - M), (0, 0)))

    # Pre-assemble the signed Hamilton block matrix (fused over taps) in bf16,
    # once per call, in the wrapper.  out_q is padded to P so 4*P % 128 == 0
    # (lane-dense output stores).
    P = _round_up(out_q, 32)

    def prep(wc):
        wf = wc[:, :, ::-1, ::-1]                                  # spatial flip
        wf = jnp.transpose(wf, (2, 3, 0, 1)).reshape(n_taps, in_q, out_q)
        return jnp.pad(wf.astype(jnp.float32), ((0, 0), (0, 0), (0, P - out_q)))

    comps = (prep(r_w), prep(i_w), prep(j_w), prep(k_w))           # (taps, in_q, P)
    ham_rows = []
    for row in _HAMILTON:
        blocks = [comps[c] if sgn > 0 else -comps[c] for (c, sgn) in row]
        ham_rows.append(jnp.concatenate(blocks, axis=-1))          # (taps, in_q, 4P)
    w_h = jnp.concatenate(ham_rows, axis=1)                        # (taps, 4*in_q, 4P)
    w_fused = w_h.reshape(K, 4 * P).astype(jnp.bfloat16)           # (n_taps*Cin, 4P)

    if bias is None:
        bias = jnp.zeros((4 * out_q,), jnp.float32)
    b_pad = jnp.pad(bias.astype(jnp.float32).reshape(4, out_q),
                    ((0, 0), (0, P - out_q))).reshape(1, 4 * P)

    grid = (M_pad // tm,)
    out_flat = pl.pallas_call(
        _qtconv_kernel,
        out_shape=jax.ShapeDtypeStruct((M_pad, 4 * P), jnp.float32),
        grid_spec=pltpu.PrefetchScalarGridSpec(
            num_scalar_prefetch=0,
            grid=grid,
            in_specs=[
                pl.BlockSpec((tm, K), lambda m: (m, 0)),      # patches tile
                pl.BlockSpec((K, 4 * P), lambda m: (0, 0)),   # Hamilton W (resident)
                pl.BlockSpec((1, 4 * P), lambda m: (0, 0)),   # bias (resident)
            ],
            out_specs=pl.BlockSpec((tm, 4 * P), lambda m: (m, 0)),
        ),
        compiler_params=pltpu.CompilerParams(
            dimension_semantics=("parallel",)),
    )(patches, w_fused, b_pad)

    # Strip M padding, drop the per-block lane padding, back to NCHW.
    out = out_flat[:M].reshape(N, H_out, W_out, 4, P)[..., :out_q]
    out = out.reshape(N, H_out, W_out, 4 * out_q)
    return jnp.transpose(out, (0, 3, 1, 2)).astype(x.dtype)


def quaternion_transpose_conv2d_reference(x, r_w, i_w, j_w, k_w, bias, *,
                                          stride=1, padding=0, output_padding=0,
                                          dilation=1):
    """Pure-JAX reference: same math as F.conv_transpose2d(x, W_hamilton, ...)."""
    in_q, out_q, kH, kW = r_w.shape
    cat_r = jnp.concatenate([r_w, -i_w, -j_w, -k_w], axis=1)
    cat_i = jnp.concatenate([i_w,  r_w, -k_w,  j_w], axis=1)
    cat_j = jnp.concatenate([j_w,  k_w,  r_w, -i_w], axis=1)
    cat_k = jnp.concatenate([k_w, -j_w,  i_w,  r_w], axis=1)
    w_t = jnp.concatenate([cat_r, cat_i, cat_j, cat_k], axis=0)   # (4in_q, 4out_q, kH, kW)

    sH, sW = _pair(stride)
    pH, pW = _pair(padding)
    opH, opW = _pair(output_padding)
    dH, dW = _pair(dilation)

    w_conv = jnp.transpose(w_t[:, :, ::-1, ::-1], (1, 0, 2, 3))   # OIHW, flipped
    y = lax.conv_general_dilated(
        x, w_conv,
        window_strides=(1, 1),
        padding=((dH * (kH - 1) - pH, dH * (kH - 1) - pH + opH),
                 (dW * (kW - 1) - pW, dW * (kW - 1) - pW + opW)),
        lhs_dilation=(sH, sW),
        rhs_dilation=(dH, dW),
        dimension_numbers=('NCHW', 'OIHW', 'NCHW'),
        precision=lax.Precision.HIGHEST)
    if bias is not None:
        y = y + bias.reshape(1, -1, 1, 1)
    return y


if __name__ == "__main__":
    # UnilateralQuaternionTransposeConv(in_channels=8, out_channels=8, kernel_size=3,
    #   stride=2, padding=1, output_padding=1, dilatation=1, bias=True,
    #   init_criterion='glorot', weight_init='unitary', rotation=False)
    in_q, out_q = 8, 8                 # quaternion channels (real channels = 4x)
    kH = kW = 3
    stride, padding, output_padding, dilation = 2, 1, 1, 1
    N, H, W = 2, 8, 8

    key = jax.random.PRNGKey(0)
    kx, kr, ki, kj, kk, kb = jax.random.split(key, 6)

    limit = float(np.sqrt(6.0 / (in_q + out_q)))      # glorot limit, as in init_parameters()
    wshape = (in_q, out_q, kH, kW)                    # get_kernel_and_weight_shape -> (in, out, kh, kw)
    r_w = jax.random.uniform(kr, wshape, jnp.float32, -limit, limit)
    i_w = jax.random.uniform(ki, wshape, jnp.float32, -limit, limit)
    j_w = jax.random.uniform(kj, wshape, jnp.float32, -limit, limit)
    k_w = jax.random.uniform(kk, wshape, jnp.float32, -limit, limit)
    bias = 0.1 * jax.random.normal(kb, (4 * out_q,), jnp.float32)

    x = jax.random.normal(kx, (N, 4 * in_q, H, W), jnp.float32)

    y = quaternion_transpose_conv2d_pallas(
        x, r_w, i_w, j_w, k_w, bias,
        stride=stride, padding=padding, output_padding=output_padding,
        dilation=dilation)
    jax.block_until_ready(y)

    # Reference with operands rounded to bf16 (matching the kernel's MXU input
    # precision; accumulation is f32 in both), exercising the full
    # conv_transpose + Hamilton-block semantics.
    def rb(a):
        return a.astype(jnp.bfloat16).astype(jnp.float32)

    y_ref = quaternion_transpose_conv2d_reference(
        rb(x), rb(r_w), rb(i_w), rb(j_w), rb(k_w), bias,
        stride=stride, padding=padding, output_padding=output_padding,
        dilation=dilation)

    H_out = (H - 1) * stride - 2 * padding + dilation * (kH - 1) + output_padding + 1
    W_out = (W - 1) * stride - 2 * padding + dilation * (kW - 1) + output_padding + 1
    assert y.shape == (N, 4 * out_q, H_out, W_out), y.shape

    np.testing.assert_allclose(np.asarray(y), np.asarray(y_ref), rtol=2e-3, atol=2e-3)
    print("KERNEL_OK")
</pallas_src>

<mosaic_0001>
module attributes {stable_mosaic.version = 11 : i64} {
  func.func @_qtconv_kernel(%arg0: i32, %arg1: memref<256x288xbf16, #tpu.memory_space<vmem>>, %arg2: memref<288x128xbf16, #tpu.memory_space<vmem>>, %arg3: memref<1x128xf32, #tpu.memory_space<vmem>>, %arg4: memref<256x128xf32, #tpu.memory_space<vmem>>) attributes {dimension_semantics = [#tpu.dimension_semantics<parallel>], iteration_bounds = array<i64: 2>, scalar_prefetch = 0 : i64, scratch_operands = 0 : i64, tpu.core_type = #tpu.core_type<tc>, window_params = [{transform_indices = @transform_0, window_bounds = array<i64: 256, 288>}, {pipeline_mode = #tpu.pipeline_mode<synchronous>, transform_indices = @transform_1, window_bounds = array<i64: 288, 128>}, {pipeline_mode = #tpu.pipeline_mode<synchronous>, transform_indices = @transform_2, window_bounds = array<i64: 1, 128>}, {transform_indices = @transform_3, window_bounds = array<i64: 256, 128>}]} {
    %c0 = arith.constant 0 : index
    %c0_0 = arith.constant 0 : index
    %0 = vector.load %arg1[%c0, %c0_0] : memref<256x288xbf16, #tpu.memory_space<vmem>>, vector<256x288xbf16>
    %c0_1 = arith.constant 0 : index
    %c0_2 = arith.constant 0 : index
    %1 = vector.load %arg2[%c0_1, %c0_2] : memref<288x128xbf16, #tpu.memory_space<vmem>>, vector<288x128xbf16>
    %cst = arith.constant dense<0.000000e+00> : vector<256x128xf32>
    %2 = tpu.matmul %0, %1, %cst {dimension_numbers = #tpu.dot_dimension_numbers<[1], [0], [0], [1], [0, 0, 1, 1], [], []>} : vector<256x288xbf16>, vector<288x128xbf16>, vector<256x128xf32> -> vector<256x128xf32>
    %c0_3 = arith.constant 0 : index
    %c0_4 = arith.constant 0 : index
    %3 = vector.load %arg3[%c0_3, %c0_4] : memref<1x128xf32, #tpu.memory_space<vmem>>, vector<1x128xf32>
    %4 = vector.broadcast %3 : vector<1x128xf32> to vector<256x128xf32>
    %5 = arith.addf %2, %4 : vector<256x128xf32>
    %c0_5 = arith.constant 0 : index
    %c0_6 = arith.constant 0 : index
    %6 = vector.load %arg4[%c0_5, %c0_6] : memref<256x128xf32, #tpu.memory_space<vmem>>, vector<256x128xf32>
    tpu.vector_store %arg4[%c0_5, %c0_6], %5 {strides = array<i32>} : memref<256x128xf32, #tpu.memory_space<vmem>>, vector<256x128xf32>,
    return
  }
  func.func @transform_0(%arg0: i32) -> (i32, i32) {
    %c0_i32 = arith.constant 0 : i32
    %c0_i32_0 = arith.constant 0 : i32
    return %arg0, %c0_i32 : i32, i32
  }
  func.func @transform_1(%arg0: i32) -> (i32, i32) {
    %c0_i32 = arith.constant 0 : i32
    %c0_i32_0 = arith.constant 0 : i32
    %c0_i32_1 = arith.constant 0 : i32
    return %c0_i32, %c0_i32_0 : i32, i32
  }
  func.func @transform_2(%arg0: i32) -> (i32, i32) {
    %c0_i32 = arith.constant 0 : i32
    %c0_i32_0 = arith.constant 0 : i32
    %c0_i32_1 = arith.constant 0 : i32
    return %c0_i32, %c0_i32_0 : i32, i32
  }
  func.func @transform_3(%arg0: i32) -> (i32, i32) {
    %c0_i32 = arith.constant 0 : i32
    %c0_i32_0 = arith.constant 0 : i32
    return %arg0, %c0_i32 : i32, i32
  }
}

</mosaic_0001>

<llo_original>
// kernel: tpu_custom_call.1
$region0: #{tpu_custom_call.1}
  #allocation0 [shape = 'u32[]', space=smem, size = 0x4, offset = 0x4, fixed_abs, tag = 'smem constant byte address 0x4 - core index']
  #allocation1 [shape = 'u32[144,128]{1,0:T(1,128)}', space=vmem, size = 0x12000, scoped, tag = 'internal scratch']
  %s0 = inlined_call_operand.vmem [shape: bf16[512,288], index: 0, kind: input, shape index: {}]
  %s1 = inlined_call_operand.vmem [shape: bf16[288,128], index: 1, kind: input, shape index: {}]
  %s2 = inlined_call_operand.vmem [shape: f32[1,128], index: 2, kind: input, shape index: {}]
  %s3 = inlined_call_operand.hbm [shape: f32[512,128], index: 3, kind: output, shape index: {}]
  %s4 = sld [smem:[#allocation0]]
  $region45: #{tpu_custom_call.1} parent=0
    _
  %s6 = ssub.s32 1, %s4
  %s7 = scalar_select 0, %s6, %s4
  $region1: #{tpu_custom_call.1} parent=0
    #allocation2 [shape = 'u8[262144]{0}', space=vmem, size = 0x40000, scoped, tag = 'output window, operand 0']
    #allocation3 [shape = 's32[2]{0}', space=sflag, size = 0x8, scoped, tag = 'scoped memory for tpu_custom_call.1']
    %8 = vsyncpa [#allocation3], 0
    %s9 = scalar_lea.sflag [#allocation3], 1
    %10 = vsyncpa %s9, 0
    loop: start=0, step=1, limit=4
    $region2: #{tpu_custom_call.1} parent=1 // loop_pre_header
      _
    $region3: #{tpu_custom_call.1} parent=1 // loop_header
      %s12 = sphi 0, %s16
      %p13 = scmp.ge.s32.totalorder %s12, 4
      %s22 = sphi 0, %s24
      %s25 = sphi 0, %s22
      %s26 = sphi 0, %s25
      %s42 = sphi 0, %s26
      %s46 = sphi 0, %s46
      %s48 = sphi 0, %s46
      %s49 = sphi 0, %s48
      %s63 = sphi 0, %s49
      %s67 = sphi 0, %s67
      %s69 = sphi 0, %s67
      %s70 = sphi 0, %s69
      %s84 = sphi 0, %s70
      %s90 = sphi 0, %s92
      %s93 = sphi 0, %s90
      %s94 = sphi 0, %s93
      %s110 = sphi 0, %s94
    $region4: #{tpu_custom_call.1} parent=1 // loop_header_branch
      %15 = sbr.rel (%p13) target = $region8
    $region5: #{tpu_custom_call.1} parent=1 // loop_body
      %s17 = ssub.s32 %s12, 1
      %s18 = ssub.s32 %s12, 2
      %s19 = sadd.s32 %s12, 1
      %s20 = ssub.s32 %s12, %s19
      %p21 = scmp.eq.s32.totalorder %s20, 0
      %s23 = sadd.s32 %s22, 1
      %s24 = scalar_select %p21, %s22, %s23
      %p27 = pneg %p21
      %p28 = scmp.eq.s32.totalorder %s12, 1
      %p29 = por %p27, %p28
      %p30 = scmp.ne.s32.totalorder %s22, %s25
      %p31 = scmp.eq.s32.totalorder %s12, 0
      %p32 = por %p30, %p31
      %p33 = scmp.ne.s32.totalorder %s22, %s25
      %p34 = scmp.eq.s32.totalorder %s17, 1
      %p35 = por %p33, %p34
      %p36 = scmp.ne.s32.totalorder %s25, %s26
      %p37 = scmp.eq.s32.totalorder %s17, 0
      %p38 = por %p36, %p37
      %p39 = scmp.ne.s32.totalorder %s25, %s26
      %p40 = scmp.eq.s32.totalorder %s18, 1
      %p41 = por %p39, %p40
      %p43 = scmp.ne.s32.totalorder %s26, %s42
      %p44 = scmp.eq.s32.totalorder %s18, 0
      %p45 = por %p43, %p44
      %s47 = sadd.s32 %s46, 1
      %p50 = scmp.eq.s32.totalorder %s12, 1
      %p51 = scmp.ne.s32.totalorder %s46, %s48
      %p52 = scmp.eq.s32.totalorder %s12, 0
      %p53 = por %p51, %p52
      %p54 = scmp.ne.s32.totalorder %s46, %s48
      %p55 = scmp.eq.s32.totalorder %s17, 1
      %p56 = por %p54, %p55
      %p57 = scmp.ne.s32.totalorder %s48, %s49
      %p58 = scmp.eq.s32.totalorder %s17, 0
      %p59 = por %p57, %p58
      %p60 = scmp.ne.s32.totalorder %s48, %s49
      %p61 = scmp.eq.s32.totalorder %s18, 1
      %p62 = por %p60, %p61
      %p64 = scmp.ne.s32.totalorder %s49, %s63
      %p65 = scmp.eq.s32.totalorder %s18, 0
      %p66 = por %p64, %p65
      %s68 = sadd.s32 %s67, 1
      %p71 = scmp.eq.s32.totalorder %s12, 1
      %p72 = scmp.ne.s32.totalorder %s67, %s69
      %p73 = scmp.eq.s32.totalorder %s12, 0
      %p74 = por %p72, %p73
      %p75 = scmp.ne.s32.totalorder %s67, %s69
      %p76 = scmp.eq.s32.totalorder %s17, 1
      %p77 = por %p75, %p76
      %p78 = scmp.ne.s32.totalorder %s69, %s70
      %p79 = scmp.eq.s32.totalorder %s17, 0
      %p80 = por %p78, %p79
      %p81 = scmp.ne.s32.totalorder %s69, %s70
      %p82 = scmp.eq.s32.totalorder %s18, 1
      %p83 = por %p81, %p82
      %p85 = scmp.ne.s32.totalorder %s70, %s84
      %p86 = scmp.eq.s32.totalorder %s18, 0
      %p87 = por %p85, %p86
      %s88 = ssub.s32 %s12, %s19
      %p89 = scmp.eq.s32.totalorder %s88, 0
      %s91 = sadd.s32 %s90, 1
      %s92 = scalar_select %p89, %s90, %s91
      %p95 = pneg %p89
      %p96 = scmp.eq.s32.totalorder %s12, 1
      %p97 = por %p95, %p96
      %p98 = scmp.ne.s32.totalorder %s90, %s93
      %p99 = scmp.eq.s32.totalorder %s12, 0
      %p100 = por %p98, %p99
      %p101 = scmp.ne.s32.totalorder %s90, %s93
      %p102 = scmp.eq.s32.totalorder %s17, 1
      %p103 = por %p101, %p102
      %p104 = scmp.ne.s32.totalorder %s93, %s94
      %p105 = scmp.eq.s32.totalorder %s17, 0
      %p106 = por %p104, %p105
      %p107 = scmp.ne.s32.totalorder %s93, %s94
      %p108 = scmp.eq.s32.totalorder %s18, 1
      %p109 = por %p107, %p108
      %p111 = scmp.ne.s32.totalorder %s94, %s110
      %p112 = scmp.eq.s32.totalorder %s18, 0
      %p113 = por %p111, %p112
      %p114 = scmp.le.s32.totalorder 1, %s12
      %p115 = scmp.lt.s32.totalorder %s12, 3
      %p116 = pnand %p114, %p115
      %p117 = pneg %p116
      // Predicated region
      $region9: #{tpu_custom_call.1} parent=5 // pred_check
        _
      $region10: #{tpu_custom_call.1} parent=5 // pred_check_branch
        %119 = sbr.rel (%p116) target = $region12
      $region11: #{tpu_custom_call.1} parent=5 // pred_region
        %s120 = ssub.s32 %s12, 1
        // Predicated region
        $region13: #{tpu_custom_call.1} parent=11 // pred_check
          %p121 = pneg %p59
        $region14: #{tpu_custom_call.1} parent=11 // pred_check_branch
          %123 = sbr.rel (%p121) target = $region16
        $region15: #{tpu_custom_call.1} parent=11 // pred_region
          _
        $region16: #{tpu_custom_call.1} parent=11 // pred_fallthru
          _
        // Predicated region
        $region17: #{tpu_custom_call.1} parent=11 // pred_check
          %p124 = pneg %p80
        $region18: #{tpu_custom_call.1} parent=11 // pred_check_branch
          %126 = sbr.rel (%p124) target = $region20
        $region19: #{tpu_custom_call.1} parent=11 // pred_region
          _
        $region20: #{tpu_custom_call.1} parent=11 // pred_fallthru
          _
      $region12: #{tpu_custom_call.1} parent=5 // pred_fallthru
        _
      %p127 = scmp.lt.s32.totalorder %s12, 2
      // Predicated region
      $region21: #{tpu_custom_call.1} parent=5 // pred_check
        %p128 = pneg %p127
      $region22: #{tpu_custom_call.1} parent=5 // pred_check_branch
        %130 = sbr.rel (%p128) target = $region24
      $region23: #{tpu_custom_call.1} parent=5 // pred_region
        // Predicated region
        $region25: #{tpu_custom_call.1} parent=23 // pred_check
          %p131 = pneg %p32
        $region26: #{tpu_custom_call.1} parent=23 // pred_check_branch
          %133 = sbr.rel (%p131) target = $region28
        $region27: #{tpu_custom_call.1} parent=23 // pred_region
          %s134 = smul.u32 32, %s12
          %p135 = scmp.lt.s32.totalorder %s134, 63
          %s136 = scalar_select %p135, %s134, 63
          %s137 = smul.addr %s136, 3
          %s138 = smul.addr %s137, 4
          %s139 = scalar_lea.vmem %s0, %s138
          %s140 = smul.u32 32, %s12
        $region28: #{tpu_custom_call.1} parent=23 // pred_fallthru
          _
      $region24: #{tpu_custom_call.1} parent=5 // pred_fallthru
        _
      %p141 = scmp.le.s32.totalorder 1, %s12
      %p142 = scmp.lt.s32.totalorder %s12, 3
      %p143 = pnand %p141, %p142
      %p144 = pneg %p143
      // Predicated region
      $region29: #{tpu_custom_call.1} parent=5 // pred_check
        _
      $region30: #{tpu_custom_call.1} parent=5 // pred_check_branch
        %146 = sbr.rel (%p143) target = $region32
      $region31: #{tpu_custom_call.1} parent=5 // pred_region
        %s147 = ssub.s32 %s12, 1
        %s148 = smul.u32 32, %s17
        %p149 = scmp.lt.s32.totalorder %s148, 63
        %s150 = scalar_select %p149, %s148, 63
        %s151 = smul.addr %s150, 3
        %s152 = smul.addr %s151, 4
        %s153 = scalar_lea.vmem %s0, %s152
        %p154 = pneg %p38
        %p155 = pneg %p35
        %p156 = pneg %p59
        %p157 = pneg %p56
        %p158 = pneg %p80
        %p159 = pneg %p77
        %p160 = pneg %p106
        %p161 = pneg %p103
        %s162 = sand.u32 %s93, 1
        %s163 = scalar_lea.sflag [#allocation3], %s162
        %s164 = sand.u32 %s93, 1
        %s165 = smul.addr %s164, 256
        %s166 = scalar_lea.vmem [#allocation2], %s165
        %s167 = smul.u32 32, %s17
        %p168 = scmp.lt.s32.totalorder %s167, 63
        %s169 = scalar_select %p168, %s167, 63
        %s170 = smul.addr %s169, 3
        %s171 = smul.addr %s170, 4
        %s172 = scalar_lea.vmem %s0, %s171
        %s173 = smul.u32 32, %s17
        %s174 = smul.u32 32, %s17
        %v176 = vld [vmem:[%s172] sm:$0xff]
        %v177 = vld [vmem:[%s172 + $0x8] sm:$0xf]
        %v178 = vld [vmem:[%s172 + $0xc] sm:$0xff]
        %v179 = vld [vmem:[%s172 + $0x14] sm:$0xf]
        %v180 = vld [vmem:[%s172 + $0x18] sm:$0xff]
        %v181 = vld [vmem:[%s172 + $0x20] sm:$0xf]
        %v182 = vld [vmem:[%s172 + $0x24] sm:$0xff]
        %v183 = vld [vmem:[%s172 + $0x2c] sm:$0xf]
        %v184 = vld [vmem:[%s172 + $0x30] sm:$0xff]
        %v185 = vld [vmem:[%s172 + $0x38] sm:$0xf]
        %v186 = vld [vmem:[%s172 + $0x3c] sm:$0xff]
        %v187 = vld [vmem:[%s172 + $0x44] sm:$0xf]
        %v188 = vld [vmem:[%s172 + $0x48] sm:$0xff]
        %v189 = vld [vmem:[%s172 + $0x50] sm:$0xf]
        %v190 = vld [vmem:[%s172 + $0x54] sm:$0xff]
        %v191 = vld [vmem:[%s172 + $0x5c] sm:$0xf]
        %v192 = vld [vmem:[%s172 + $0x60] sm:$0xff]
        %v193 = vld [vmem:[%s172 + $0x68] sm:$0xf]
        %v194 = vld [vmem:[%s172 + $0x6c] sm:$0xff]
        %v195 = vld [vmem:[%s172 + $0x74] sm:$0xf]
        %v196 = vld [vmem:[%s172 + $0x78] sm:$0xff]
        %v197 = vld [vmem:[%s172 + $0x80] sm:$0xf]
        %v198 = vld [vmem:[%s172 + $0x84] sm:$0xff]
        %v199 = vld [vmem:[%s172 + $0x8c] sm:$0xf]
        %v200 = vld [vmem:[%s172 + $0x90] sm:$0xff]
        %v201 = vld [vmem:[%s172 + $0x98] sm:$0xf]
        %v202 = vld [vmem:[%s172 + $0x9c] sm:$0xff]
        %v203 = vld [vmem:[%s172 + $0xa4] sm:$0xf]
        %v204 = vld [vmem:[%s172 + $0xa8] sm:$0xff]
        %v205 = vld [vmem:[%s172 + $0xb0] sm:$0xf]
        %v206 = vld [vmem:[%s172 + $0xb4] sm:$0xff]
        %v207 = vld [vmem:[%s172 + $0xbc] sm:$0xf]
        %v208 = vld [vmem:[%s172 + $0xc0] sm:$0xff]
        %v209 = vld [vmem:[%s172 + $0xc8] sm:$0xf]
        %v210 = vld [vmem:[%s172 + $0xcc] sm:$0xff]
        %v211 = vld [vmem:[%s172 + $0xd4] sm:$0xf]
        %v212 = vld [vmem:[%s172 + $0xd8] sm:$0xff]
        %v213 = vld [vmem:[%s172 + $0xe0] sm:$0xf]
        %v214 = vld [vmem:[%s172 + $0xe4] sm:$0xff]
        %v215 = vld [vmem:[%s172 + $0xec] sm:$0xf]
        %v216 = vld [vmem:[%s172 + $0xf0] sm:$0xff]
        %v217 = vld [vmem:[%s172 + $0xf8] sm:$0xf]
        %v218 = vld [vmem:[%s172 + $0xfc] sm:$0xff]
        %v219 = vld [vmem:[%s172 + $0x104] sm:$0xf]
        %v220 = vld [vmem:[%s172 + $0x108] sm:$0xff]
        %v221 = vld [vmem:[%s172 + $0x110] sm:$0xf]
        %v222 = vld [vmem:[%s172 + $0x114] sm:$0xff]
        %v223 = vld [vmem:[%s172 + $0x11c] sm:$0xf]
        %v224 = vld [vmem:[%s172 + $0x120] sm:$0xff]
        %v225 = vld [vmem:[%s172 + $0x128] sm:$0xf]
        %v226 = vld [vmem:[%s172 + $0x12c] sm:$0xff]
        %v227 = vld [vmem:[%s172 + $0x134] sm:$0xf]
        %v228 = vld [vmem:[%s172 + $0x138] sm:$0xff]
        %v229 = vld [vmem:[%s172 + $0x140] sm:$0xf]
        %v230 = vld [vmem:[%s172 + $0x144] sm:$0xff]
        %v231 = vld [vmem:[%s172 + $0x14c] sm:$0xf]
        %v232 = vld [vmem:[%s172 + $0x150] sm:$0xff]
        %v233 = vld [vmem:[%s172 + $0x158] sm:$0xf]
        %v234 = vld [vmem:[%s172 + $0x15c] sm:$0xff]
        %v235 = vld [vmem:[%s172 + $0x164] sm:$0xf]
        %v236 = vld [vmem:[%s172 + $0x168] sm:$0xff]
        %v237 = vld [vmem:[%s172 + $0x170] sm:$0xf]
        %v238 = vld [vmem:[%s172 + $0x174] sm:$0xff]
        %v239 = vld [vmem:[%s172 + $0x17c] sm:$0xf]
        %v240 = vld [vmem:[%s1] sm:$0xf]
        %v241 = vld [vmem:[%s1 + $0x4] sm:$0xf]
        %v242 = vld [vmem:[%s1 + $0x8] sm:$0xf]
        %v243 = vld [vmem:[%s1 + $0xc] sm:$0xf]
        %v244 = vld [vmem:[%s1 + $0x10] sm:$0xf]
        %v245 = vld [vmem:[%s1 + $0x14] sm:$0xf]
        %v246 = vld [vmem:[%s1 + $0x18] sm:$0xf]
        %v247 = vld [vmem:[%s1 + $0x1c] sm:$0xf]
        %v248 = vld [vmem:[%s1 + $0x20] sm:$0xf]
        %v249 = vld [vmem:[%s1 + $0x24] sm:$0xf]
        %v250 = vld [vmem:[%s1 + $0x28] sm:$0xf]
        %v251 = vld [vmem:[%s1 + $0x2c] sm:$0xf]
        %v252 = vld [vmem:[%s1 + $0x30] sm:$0xf]
        %v253 = vld [vmem:[%s1 + $0x34] sm:$0xf]
        %v254 = vld [vmem:[%s1 + $0x38] sm:$0xf]
        %v255 = vld [vmem:[%s1 + $0x3c] sm:$0xf]
        %v256 = vld [vmem:[%s1 + $0x40] sm:$0xf]
        %v257 = vld [vmem:[%s1 + $0x44] sm:$0xf]
        %v258 = vld [vmem:[%s1 + $0x48] sm:$0xf]
        %v259 = vld [vmem:[%s1 + $0x4c] sm:$0xf]
        %v260 = vld [vmem:[%s1 + $0x50] sm:$0xf]
        %v261 = vld [vmem:[%s1 + $0x54] sm:$0xf]
        %v262 = vld [vmem:[%s1 + $0x58] sm:$0xf]
        %v263 = vld [vmem:[%s1 + $0x5c] sm:$0xf]
        %v264 = vld [vmem:[%s1 + $0x60] sm:$0xf]
        %v265 = vld [vmem:[%s1 + $0x64] sm:$0xf]
        %v266 = vld [vmem:[%s1 + $0x68] sm:$0xf]
        %v267 = vld [vmem:[%s1 + $0x6c] sm:$0xf]
        %v268 = vld [vmem:[%s1 + $0x70] sm:$0xf]
        %v269 = vld [vmem:[%s1 + $0x74] sm:$0xf]
        %v270 = vld [vmem:[%s1 + $0x78] sm:$0xf]
        %v271 = vld [vmem:[%s1 + $0x7c] sm:$0xf]
        %v272 = vld [vmem:[%s1 + $0x80] sm:$0xf]
        %v273 = vld [vmem:[%s1 + $0x84] sm:$0xf]
        %v274 = vld [vmem:[%s1 + $0x88] sm:$0xf]
        %v275 = vld [vmem:[%s1 + $0x8c] sm:$0xf]
        %v276 = vld [vmem:[%s2] sm:$0x1]
        %v278 = vlaneseq
        %v279 = vshrl.u32 %v278, 7
        %v280 = vsub.s32 0, %v279
        %v281 = vrot.slane %v276, %v280
        %v347 = vunpack.c.l.b16 %v176
        %v348 = vunpack.c.h.b16 %v176
        %v349 = vunpack.c.l.b16 %v177
        %v350 = vunpack.c.l.b16 %v178
        %v351 = vunpack.c.h.b16 %v178
        %v352 = vunpack.c.l.b16 %v179
        %v353 = vunpack.c.l.b16 %v180
        %v354 = vunpack.c.h.b16 %v180
        %v355 = vunpack.c.l.b16 %v181
        %v356 = vunpack.c.l.b16 %v182
        %v357 = vunpack.c.h.b16 %v182
        %v358 = vunpack.c.l.b16 %v183
        %v359 = vunpack.c.l.b16 %v184
        %v360 = vunpack.c.h.b16 %v184
        %v361 = vunpack.c.l.b16 %v185
        %v362 = vunpack.c.l.b16 %v186
        %v363 = vunpack.c.h.b16 %v186
        %v364 = vunpack.c.l.b16 %v187
        %v365 = vunpack.c.l.b16 %v188
        %v366 = vunpack.c.h.b16 %v188
        %v367 = vunpack.c.l.b16 %v189
        %v368 = vunpack.c.l.b16 %v190
        %v369 = vunpack.c.h.b16 %v190
        %v370 = vunpack.c.l.b16 %v191
        %v371 = vunpack.c.l.b16 %v192
        %v372 = vunpack.c.h.b16 %v192
        %v373 = vunpack.c.l.b16 %v193
        %v374 = vunpack.c.l.b16 %v194
        %v375 = vunpack.c.h.b16 %v194
        %v376 = vunpack.c.l.b16 %v195
        %v377 = vunpack.c.l.b16 %v196
        %v378 = vunpack.c.h.b16 %v196
        %v379 = vunpack.c.l.b16 %v197
        %v380 = vunpack.c.l.b16 %v198
        %v381 = vunpack.c.h.b16 %v198
        %v382 = vunpack.c.l.b16 %v199
        %v383 = vunpack.c.l.b16 %v200
        %v384 = vunpack.c.h.b16 %v200
        %v385 = vunpack.c.l.b16 %v201
        %v386 = vunpack.c.l.b16 %v202
        %v387 = vunpack.c.h.b16 %v202
        %v388 = vunpack.c.l.b16 %v203
        %v389 = vunpack.c.l.b16 %v204
        %v390 = vunpack.c.h.b16 %v204
        %v391 = vunpack.c.l.b16 %v205
        %v392 = vunpack.c.l.b16 %v206
        %v393 = vunpack.c.h.b16 %v206
        %v394 = vunpack.c.l.b16 %v207
        %v395 = vunpack.c.l.b16 %v208
        %v396 = vunpack.c.h.b16 %v208
        %v397 = vunpack.c.l.b16 %v209
        %v398 = vunpack.c.l.b16 %v210
        %v399 = vunpack.c.h.b16 %v210
        %v400 = vunpack.c.l.b16 %v211
        %v401 = vunpack.c.l.b16 %v212
        %v402 = vunpack.c.h.b16 %v212
        %v403 = vunpack.c.l.b16 %v213
        %v404 = vunpack.c.l.b16 %v214
        %v405 = vunpack.c.h.b16 %v214
        %v406 = vunpack.c.l.b16 %v215
        %v407 = vunpack.c.l.b16 %v216
        %v408 = vunpack.c.h.b16 %v216
        %v409 = vunpack.c.l.b16 %v217
        %v410 = vunpack.c.l.b16 %v218
        %v411 = vunpack.c.h.b16 %v218
        %v412 = vunpack.c.l.b16 %v219
        %v413 = vunpack.c.l.b16 %v220
        %v414 = vunpack.c.h.b16 %v220
        %v415 = vunpack.c.l.b16 %v221
        %v416 = vunpack.c.l.b16 %v222
        %v417 = vunpack.c.h.b16 %v222
        %v418 = vunpack.c.l.b16 %v223
        %v419 = vunpack.c.l.b16 %v224
        %v420 = vunpack.c.h.b16 %v224
        %v421 = vunpack.c.l.b16 %v225
        %v422 = vunpack.c.l.b16 %v226
        %v423 = vunpack.c.h.b16 %v226
        %v424 = vunpack.c.l.b16 %v227
        %v425 = vunpack.c.l.b16 %v228
        %v426 = vunpack.c.h.b16 %v228
        %v427 = vunpack.c.l.b16 %v229
        %v428 = vunpack.c.l.b16 %v230
        %v429 = vunpack.c.h.b16 %v230
        %v430 = vunpack.c.l.b16 %v231
        %v431 = vunpack.c.l.b16 %v232
        %v432 = vunpack.c.h.b16 %v232
        %v433 = vunpack.c.l.b16 %v233
        %v434 = vunpack.c.l.b16 %v234
        %v435 = vunpack.c.h.b16 %v234
        %v436 = vunpack.c.l.b16 %v235
        %v437 = vunpack.c.l.b16 %v236
        %v438 = vunpack.c.h.b16 %v236
        %v439 = vunpack.c.l.b16 %v237
        %v440 = vunpack.c.l.b16 %v238
        %v441 = vunpack.c.h.b16 %v238
        %v442 = vunpack.c.l.b16 %v239
        %v443 = vpack.c.b16 %v350, %v347
        %v444 = vpack.c.b16 %v351, %v348
        %v445 = vpack.c.b16 %v352, %v349
        %v446 = vpack.c.b16 %v356, %v353
        %v447 = vpack.c.b16 %v357, %v354
        %v448 = vpack.c.b16 %v358, %v355
        %v449 = vpack.c.b16 %v362, %v359
        %v450 = vpack.c.b16 %v363, %v360
        %v451 = vpack.c.b16 %v364, %v361
        %v452 = vpack.c.b16 %v368, %v365
        %v453 = vpack.c.b16 %v369, %v366
        %v454 = vpack.c.b16 %v370, %v367
        %v455 = vpack.c.b16 %v374, %v371
        %v456 = vpack.c.b16 %v375, %v372
        %v457 = vpack.c.b16 %v376, %v373
        %v458 = vpack.c.b16 %v380, %v377
        %v459 = vpack.c.b16 %v381, %v378
        %v460 = vpack.c.b16 %v382, %v379
        %v461 = vpack.c.b16 %v386, %v383
        %v462 = vpack.c.b16 %v387, %v384
        %v463 = vpack.c.b16 %v388, %v385
        %v464 = vpack.c.b16 %v392, %v389
        %v465 = vpack.c.b16 %v393, %v390
        %v466 = vpack.c.b16 %v394, %v391
        %v467 = vpack.c.b16 %v398, %v395
        %v468 = vpack.c.b16 %v399, %v396
        %v469 = vpack.c.b16 %v400, %v397
        %v470 = vpack.c.b16 %v404, %v401
        %v471 = vpack.c.b16 %v405, %v402
        %v472 = vpack.c.b16 %v406, %v403
        %v473 = vpack.c.b16 %v410, %v407
        %v474 = vpack.c.b16 %v411, %v408
        %v475 = vpack.c.b16 %v412, %v409
        %v476 = vpack.c.b16 %v416, %v413
        %v477 = vpack.c.b16 %v417, %v414
        %v478 = vpack.c.b16 %v418, %v415
        %v479 = vpack.c.b16 %v422, %v419
        %v480 = vpack.c.b16 %v423, %v420
        %v481 = vpack.c.b16 %v424, %v421
        %v482 = vpack.c.b16 %v428, %v425
        %v483 = vpack.c.b16 %v429, %v426
        %v484 = vpack.c.b16 %v430, %v427
        %v485 = vpack.c.b16 %v434, %v431
        %v486 = vpack.c.b16 %v435, %v432
        %v487 = vpack.c.b16 %v436, %v433
        %v488 = vpack.c.b16 %v440, %v437
        %v489 = vpack.c.b16 %v441, %v438
        %v490 = vpack.c.b16 %v442, %v439
        %v559 = vunpack.c.l.b16 %v240
        %v560 = vunpack.c.l.b16 %v241
        %v561 = vunpack.c.l.b16 %v242
        %v562 = vunpack.c.l.b16 %v243
        %v563 = vunpack.c.l.b16 %v244
        %v564 = vunpack.c.l.b16 %v245
        %v565 = vunpack.c.l.b16 %v246
        %v566 = vunpack.c.l.b16 %v247
        %v567 = vunpack.c.l.b16 %v248
        %v568 = vunpack.c.l.b16 %v249
        %v569 = vunpack.c.l.b16 %v250
        %v570 = vunpack.c.l.b16 %v251
        %v571 = vunpack.c.l.b16 %v252
        %v572 = vunpack.c.l.b16 %v253
        %v573 = vunpack.c.l.b16 %v254
        %v574 = vunpack.c.l.b16 %v255
        %v575 = vunpack.c.l.b16 %v256
        %v576 = vunpack.c.l.b16 %v257
        %v577 = vunpack.c.l.b16 %v258
        %v578 = vunpack.c.l.b16 %v259
        %v579 = vunpack.c.l.b16 %v260
        %v580 = vunpack.c.l.b16 %v261
        %v581 = vunpack.c.l.b16 %v262
        %v582 = vunpack.c.l.b16 %v263
        %v583 = vunpack.c.l.b16 %v264
        %v584 = vunpack.c.l.b16 %v265
        %v585 = vunpack.c.l.b16 %v266
        %v586 = vunpack.c.l.b16 %v267
        %v587 = vunpack.c.l.b16 %v268
        %v588 = vunpack.c.l.b16 %v269
        %v589 = vunpack.c.l.b16 %v270
        %v590 = vunpack.c.l.b16 %v271
        %v591 = vunpack.c.l.b16 %v272
        %v592 = vunpack.c.l.b16 %v273
        %v593 = vunpack.c.l.b16 %v274
        %v594 = vunpack.c.l.b16 %v275
        %v595 = vpack.c.b16 %v560, %v559
        %v596 = vpack.c.b16 %v562, %v561
        %v597 = vpack.c.b16 %v564, %v563
        %v598 = vpack.c.b16 %v566, %v565
        %v599 = vpack.c.b16 %v568, %v567
        %v600 = vpack.c.b16 %v570, %v569
        %v601 = vpack.c.b16 %v572, %v571
        %v602 = vpack.c.b16 %v574, %v573
        %v603 = vpack.c.b16 %v576, %v575
        %v604 = vpack.c.b16 %v578, %v577
        %v605 = vpack.c.b16 %v580, %v579
        %v606 = vpack.c.b16 %v582, %v581
        %v607 = vpack.c.b16 %v584, %v583
        %v608 = vpack.c.b16 %v586, %v585
        %v609 = vpack.c.b16 %v588, %v587
        %v610 = vpack.c.b16 %v590, %v589
        %v611 = vpack.c.b16 %v592, %v591
        %v612 = vpack.c.b16 %v594, %v593
        %vm631 = vcmask 261120
        %v633 = vsel %vm631, %v445, 0
        %v636 = vsel %vm631, %v448, 0
        %v639 = vsel %vm631, %v451, 0
        %v642 = vsel %vm631, %v454, 0
        %v645 = vsel %vm631, %v457, 0
        %v648 = vsel %vm631, %v460, 0
        %v651 = vsel %vm631, %v463, 0
        %v654 = vsel %vm631, %v466, 0
        %v657 = vsel %vm631, %v469, 0
        %v660 = vsel %vm631, %v472, 0
        %v663 = vsel %vm631, %v475, 0
        %v666 = vsel %vm631, %v478, 0
        %v669 = vsel %vm631, %v481, 0
        %v672 = vsel %vm631, %v484, 0
        %v675 = vsel %vm631, %v487, 0
        %v678 = vsel %vm631, %v490, 0
        %680 = vmatprep.subr.bf16.mxu0 0
        %681 = vmatpush1.bf16.msra.mxu0 %v602
        %682 = vmatprep.subr.bf16.mxu0 0
        %683 = vmatpush1.bf16.msra.mxu0 %v601
        %684 = vmatprep.subr.bf16.mxu0 0
        %685 = vmatpush1.bf16.msra.mxu0 %v600
        %686 = vmatprep.subr.bf16.mxu0 0
        %687 = vmatpush1.bf16.msra.mxu0 %v599
        %688 = vmatprep.subr.bf16.mxu0 0
        %689 = vmatpush1.bf16.msra.mxu0 %v598
        %690 = vmatprep.subr.bf16.mxu0 0
        %691 = vmatpush1.bf16.msra.mxu0 %v597
        %692 = vmatprep.subr.bf16.mxu0 0
        %693 = vmatpush1.bf16.msra.mxu0 %v596
        %694 = vmatprep.subr.bf16.mxu0 0
        %695 = vmatpush1.bf16.msra.mxu0 %v595
        %696 = vmatprep.subr.bf16.mxu0 0
        %697 = vmatpush2.bf16.msra.mxu0 %v610
        %698 = vmatprep.subr.bf16.mxu0 0
        %699 = vmatpush2.bf16.msra.mxu0 %v609
        %700 = vmatprep.subr.bf16.mxu0 0
        %701 = vmatpush2.bf16.msra.mxu0 %v608
        %702 = vmatprep.subr.bf16.mxu0 0
        %703 = vmatpush2.bf16.msra.mxu0 %v607
        %704 = vmatprep.subr.bf16.mxu0 0
        %705 = vmatpush2.bf16.msra.mxu0 %v606
        %706 = vmatprep.subr.bf16.mxu0 0
        %707 = vmatpush2.bf16.msra.mxu0 %v605
        %708 = vmatprep.subr.bf16.mxu0 0
        %709 = vmatpush2.bf16.msra.mxu0 %v604
        %710 = vmatprep.subr.bf16.mxu0 0
        %711 = vmatpush2.bf16.msra.mxu0 %v603
        %712 = vmatprep.mubr.bf16.mxu0 %v444
        %713 = vmatmul.mubr.bf16.gmra.mxu0 %v443
        %v714 = vpop.f32.mrf.mxu0
        %v715 = vadd.f32 %v281, %v714
        %v716 = vpop.f32.mrf.mxu0
        %v717 = vpop.f32.mrf.mxu0
        %v718 = vadd.f32 %v281, %v717
        %v719 = vpop.f32.mrf.mxu0
        %720 = vmatprep.mubr.bf16.mxu0 %v447
        %721 = vmatmul.mubr.bf16.gmra.mxu0 %v446
        %v722 = vpop.f32.mrf.mxu0
        %v723 = vadd.f32 %v281, %v722
        %v724 = vpop.f32.mrf.mxu0
        %v725 = vpop.f32.mrf.mxu0
        %v726 = vadd.f32 %v281, %v725
        %v727 = vpop.f32.mrf.mxu0
        %728 = vmatprep.mubr.bf16.mxu0 %v450
        %729 = vmatmul.mubr.bf16.gmra.mxu0 %v449
        %v730 = vpop.f32.mrf.mxu0
        %v731 = vadd.f32 %v281, %v730
        %v732 = vpop.f32.mrf.mxu0
        %v733 = vpop.f32.mrf.mxu0
        %v734 = vadd.f32 %v281, %v733
        %v735 = vpop.f32.mrf.mxu0
        %736 = vmatprep.mubr.bf16.mxu0 %v453
        %737 = vmatmul.mubr.bf16.gmra.mxu0 %v452
        %v738 = vpop.f32.mrf.mxu0
        %v739 = vadd.f32 %v281, %v738
        %v740 = vpop.f32.mrf.mxu0
        %v741 = vpop.f32.mrf.mxu0
        %v742 = vadd.f32 %v281, %v741
        %v743 = vpop.f32.mrf.mxu0
        %744 = vmatprep.mubr.bf16.mxu0 %v456
        %745 = vmatmul.mubr.bf16.gmra.mxu0 %v455
        %v746 = vpop.f32.mrf.mxu0
        %v747 = vadd.f32 %v281, %v746
        %v748 = vpop.f32.mrf.mxu0
        %v749 = vpop.f32.mrf.mxu0
        %v750 = vadd.f32 %v281, %v749
        %v751 = vpop.f32.mrf.mxu0
        %752 = vmatprep.mubr.bf16.mxu0 %v459
        %753 = vmatmul.mubr.bf16.gmra.mxu0 %v458
        %v754 = vpop.f32.mrf.mxu0
        %v755 = vadd.f32 %v281, %v754
        %v756 = vpop.f32.mrf.mxu0
        %v757 = vpop.f32.mrf.mxu0
        %v758 = vadd.f32 %v281, %v757
        %v759 = vpop.f32.mrf.mxu0
        %760 = vmatprep.mubr.bf16.mxu0 %v462
        %761 = vmatmul.mubr.bf16.gmra.mxu0 %v461
        %v762 = vpop.f32.mrf.mxu0
        %v763 = vadd.f32 %v281, %v762
        %v764 = vpop.f32.mrf.mxu0
        %v765 = vpop.f32.mrf.mxu0
        %v766 = vadd.f32 %v281, %v765
        %v767 = vpop.f32.mrf.mxu0
        %768 = vmatprep.mubr.bf16.mxu0 %v465
        %769 = vmatmul.mubr.bf16.gmra.mxu0 %v464
        %v770 = vpop.f32.mrf.mxu0
        %v771 = vadd.f32 %v281, %v770
        %v772 = vpop.f32.mrf.mxu0
        %v773 = vpop.f32.mrf.mxu0
        %v774 = vadd.f32 %v281, %v773
        %v775 = vpop.f32.mrf.mxu0
        %776 = vmatprep.mubr.bf16.mxu0 %v468
        %777 = vmatmul.mubr.bf16.gmra.mxu0 %v467
        %v778 = vpop.f32.mrf.mxu0
        %v779 = vadd.f32 %v281, %v778
        %v780 = vpop.f32.mrf.mxu0
        %v781 = vpop.f32.mrf.mxu0
        %v782 = vadd.f32 %v281, %v781
        %v783 = vpop.f32.mrf.mxu0
        %784 = vmatprep.mubr.bf16.mxu0 %v471
        %785 = vmatmul.mubr.bf16.gmra.mxu0 %v470
        %v786 = vpop.f32.mrf.mxu0
        %v787 = vadd.f32 %v281, %v786
        %v788 = vpop.f32.mrf.mxu0
        %v789 = vpop.f32.mrf.mxu0
        %v790 = vadd.f32 %v281, %v789
        %v791 = vpop.f32.mrf.mxu0
        %792 = vmatprep.mubr.bf16.mxu0 %v474
        %793 = vmatmul.mubr.bf16.gmra.mxu0 %v473
        %v794 = vpop.f32.mrf.mxu0
        %v795 = vadd.f32 %v281, %v794
        %v796 = vpop.f32.mrf.mxu0
        %v797 = vpop.f32.mrf.mxu0
        %v798 = vadd.f32 %v281, %v797
        %v799 = vpop.f32.mrf.mxu0
        %800 = vmatprep.mubr.bf16.mxu0 %v477
        %801 = vmatmul.mubr.bf16.gmra.mxu0 %v476
        %v802 = vpop.f32.mrf.mxu0
        %v803 = vadd.f32 %v281, %v802
        %v804 = vpop.f32.mrf.mxu0
        %v805 = vpop.f32.mrf.mxu0
        %v806 = vadd.f32 %v281, %v805
        %v807 = vpop.f32.mrf.mxu0
        %808 = vmatprep.mubr.bf16.mxu0 %v480
        %809 = vmatmul.mubr.bf16.gmra.mxu0 %v479
        %v810 = vpop.f32.mrf.mxu0
        %v811 = vadd.f32 %v281, %v810
        %v812 = vpop.f32.mrf.mxu0
        %v813 = vpop.f32.mrf.mxu0
        %v814 = vadd.f32 %v281, %v813
        %v815 = vpop.f32.mrf.mxu0
        %816 = vmatprep.mubr.bf16.mxu0 %v483
        %817 = vmatmul.mubr.bf16.gmra.mxu0 %v482
        %v818 = vpop.f32.mrf.mxu0
        %v819 = vadd.f32 %v281, %v818
        %v820 = vpop.f32.mrf.mxu0
        %v821 = vpop.f32.mrf.mxu0
        %v822 = vadd.f32 %v281, %v821
        %v823 = vpop.f32.mrf.mxu0
        %824 = vmatprep.mubr.bf16.mxu0 %v486
        %825 = vmatmul.mubr.bf16.gmra.mxu0 %v485
        %v826 = vpop.f32.mrf.mxu0
        %v827 = vadd.f32 %v281, %v826
        %v828 = vpop.f32.mrf.mxu0
        %v829 = vpop.f32.mrf.mxu0
        %v830 = vadd.f32 %v281, %v829
        %v831 = vpop.f32.mrf.mxu0
        %832 = vmatprep.mubr.bf16.mxu0 %v489
        %833 = vmatmul.mubr.bf16.gmra.mxu0 %v488
        %v834 = vpop.f32.mrf.mxu0
        %v835 = vadd.f32 %v281, %v834
        %v836 = vpop.f32.mrf.mxu0
        %v837 = vpop.f32.mrf.mxu0
        %v838 = vadd.f32 %v281, %v837
        %v839 = vpop.f32.mrf.mxu0
        %840 = vdwg.mxu0
        %841 = vmatprep.subr.bf16.mxu0 0
        %842 = vmatpush1.bf16.msra.mxu0 0
        %843 = vmatprep.subr.bf16.mxu0 0
        %844 = vmatpush1.bf16.msra.mxu0 0
        %845 = vmatprep.subr.bf16.mxu0 0
        %846 = vmatpush1.bf16.msra.mxu0 0
        %847 = vmatprep.subr.bf16.mxu0 0
        %848 = vmatpush1.bf16.msra.mxu0 0
        %849 = vmatprep.subr.bf16.mxu0 0
        %850 = vmatpush1.bf16.msra.mxu0 0
        %851 = vmatprep.subr.bf16.mxu0 0
        %852 = vmatpush1.bf16.msra.mxu0 0
        %853 = vmatprep.subr.bf16.mxu0 0
        %854 = vmatpush1.bf16.msra.mxu0 %v612
        %855 = vmatprep.subr.bf16.mxu0 0
        %856 = vmatpush1.bf16.msra.mxu0 %v611
        %857 = vmatprep.subr.bf16.mxu0 0
        %858 = vmatpush2.bf16.msra.mxu0 0
        %859 = vmatprep.subr.bf16.mxu0 0
        %860 = vmatpush2.bf16.msra.mxu0 0
        %861 = vmatprep.subr.bf16.mxu0 0
        %862 = vmatpush2.bf16.msra.mxu0 0
        %863 = vmatprep.subr.bf16.mxu0 0
        %864 = vmatpush2.bf16.msra.mxu0 0
        %865 = vmatprep.subr.bf16.mxu0 0
        %866 = vmatpush2.bf16.msra.mxu0 0
        %867 = vmatprep.subr.bf16.mxu0 0
        %868 = vmatpush2.bf16.msra.mxu0 0
        %869 = vmatprep.subr.bf16.mxu0 0
        %870 = vmatpush2.bf16.msra.mxu0 0
        %871 = vmatprep.subr.bf16.mxu0 0
        %872 = vmatpush2.bf16.msra.mxu0 0
        %873 = vmatprep.mubr.bf16.mxu0 0
        %874 = vmatmul.mubr.bf16.gmra.mxu0 %v633
        %v875 = vpop.f32.mrf.mxu0
        %v876 = vadd.f32 %v715, %v875
        %v877 = vpop.f32.mrf.mxu0
        %v878 = vpop.f32.mrf.mxu0
        %v879 = vadd.f32 %v718, %v878
        %v880 = vpop.f32.mrf.mxu0
        %881 = vmatprep.mubr.bf16.mxu0 0
        %882 = vmatmul.mubr.bf16.gmra.mxu0 %v636
        %v883 = vpop.f32.mrf.mxu0
        %v884 = vadd.f32 %v723, %v883
        %v885 = vpop.f32.mrf.mxu0
        %v886 = vpop.f32.mrf.mxu0
        %v887 = vadd.f32 %v726, %v886
        %v888 = vpop.f32.mrf.mxu0
        %889 = vmatprep.mubr.bf16.mxu0 0
        %890 = vmatmul.mubr.bf16.gmra.mxu0 %v639
        %v891 = vpop.f32.mrf.mxu0
        %v892 = vadd.f32 %v731, %v891
        %v893 = vpop.f32.mrf.mxu0
        %v894 = vpop.f32.mrf.mxu0
        %v895 = vadd.f32 %v734, %v894
        %v896 = vpop.f32.mrf.mxu0
        %897 = vmatprep.mubr.bf16.mxu0 0
        %898 = vmatmul.mubr.bf16.gmra.mxu0 %v642
        %v899 = vpop.f32.mrf.mxu0
        %v900 = vadd.f32 %v739, %v899
        %v901 = vpop.f32.mrf.mxu0
        %v902 = vpop.f32.mrf.mxu0
        %v903 = vadd.f32 %v742, %v902
        %v904 = vpop.f32.mrf.mxu0
        %905 = vmatprep.mubr.bf16.mxu0 0
        %906 = vmatmul.mubr.bf16.gmra.mxu0 %v645
        %v907 = vpop.f32.mrf.mxu0
        %v908 = vadd.f32 %v747, %v907
        %v909 = vpop.f32.mrf.mxu0
        %v910 = vpop.f32.mrf.mxu0
        %v911 = vadd.f32 %v750, %v910
        %v912 = vpop.f32.mrf.mxu0
        %913 = vmatprep.mubr.bf16.mxu0 0
        %914 = vmatmul.mubr.bf16.gmra.mxu0 %v648
        %v915 = vpop.f32.mrf.mxu0
        %v916 = vadd.f32 %v755, %v915
        %v917 = vpop.f32.mrf.mxu0
        %v918 = vpop.f32.mrf.mxu0
        %v919 = vadd.f32 %v758, %v918
        %v920 = vpop.f32.mrf.mxu0
        %921 = vmatprep.mubr.bf16.mxu0 0
        %922 = vmatmul.mubr.bf16.gmra.mxu0 %v651
        %v923 = vpop.f32.mrf.mxu0
        %v924 = vadd.f32 %v763, %v923
        %v925 = vpop.f32.mrf.mxu0
        %v926 = vpop.f32.mrf.mxu0
        %v927 = vadd.f32 %v766, %v926
        %v928 = vpop.f32.mrf.mxu0
        %929 = vmatprep.mubr.bf16.mxu0 0
        %930 = vmatmul.mubr.bf16.gmra.mxu0 %v654
        %v931 = vpop.f32.mrf.mxu0
        %v932 = vadd.f32 %v771, %v931
        %v933 = vpop.f32.mrf.mxu0
        %v934 = vpop.f32.mrf.mxu0
        %v935 = vadd.f32 %v774, %v934
        %v936 = vpop.f32.mrf.mxu0
        %937 = vmatprep.mubr.bf16.mxu0 0
        %938 = vmatmul.mubr.bf16.gmra.mxu0 %v657
        %v939 = vpop.f32.mrf.mxu0
        %v940 = vadd.f32 %v779, %v939
        %v941 = vpop.f32.mrf.mxu0
        %v942 = vpop.f32.mrf.mxu0
        %v943 = vadd.f32 %v782, %v942
        %v944 = vpop.f32.mrf.mxu0
        %945 = vmatprep.mubr.bf16.mxu0 0
        %946 = vmatmul.mubr.bf16.gmra.mxu0 %v660
        %v947 = vpop.f32.mrf.mxu0
        %v948 = vadd.f32 %v787, %v947
        %v949 = vpop.f32.mrf.mxu0
        %v950 = vpop.f32.mrf.mxu0
        %v951 = vadd.f32 %v790, %v950
        %v952 = vpop.f32.mrf.mxu0
        %953 = vmatprep.mubr.bf16.mxu0 0
        %954 = vmatmul.mubr.bf16.gmra.mxu0 %v663
        %v955 = vpop.f32.mrf.mxu0
        %v956 = vadd.f32 %v795, %v955
        %v957 = vpop.f32.mrf.mxu0
        %v958 = vpop.f32.mrf.mxu0
        %v959 = vadd.f32 %v798, %v958
        %v960 = vpop.f32.mrf.mxu0
        %961 = vmatprep.mubr.bf16.mxu0 0
        %962 = vmatmul.mubr.bf16.gmra.mxu0 %v666
        %v963 = vpop.f32.mrf.mxu0
        %v964 = vadd.f32 %v803, %v963
        %v965 = vpop.f32.mrf.mxu0
        %v966 = vpop.f32.mrf.mxu0
        %v967 = vadd.f32 %v806, %v966
        %v968 = vpop.f32.mrf.mxu0
        %969 = vmatprep.mubr.bf16.mxu0 0
        %970 = vmatmul.mubr.bf16.gmra.mxu0 %v669
        %v971 = vpop.f32.mrf.mxu0
        %v972 = vadd.f32 %v811, %v971
        %v973 = vpop.f32.mrf.mxu0
        %v974 = vpop.f32.mrf.mxu0
        %v975 = vadd.f32 %v814, %v974
        %v976 = vpop.f32.mrf.mxu0
        %977 = vmatprep.mubr.bf16.mxu0 0
        %978 = vmatmul.mubr.bf16.gmra.mxu0 %v672
        %v979 = vpop.f32.mrf.mxu0
        %v980 = vadd.f32 %v819, %v979
        %v981 = vpop.f32.mrf.mxu0
        %v982 = vpop.f32.mrf.mxu0
        %v983 = vadd.f32 %v822, %v982
        %v984 = vpop.f32.mrf.mxu0
        %985 = vmatprep.mubr.bf16.mxu0 0
        %986 = vmatmul.mubr.bf16.gmra.mxu0 %v675
        %v987 = vpop.f32.mrf.mxu0
        %v988 = vadd.f32 %v827, %v987
        %v989 = vpop.f32.mrf.mxu0
        %v990 = vpop.f32.mrf.mxu0
        %v991 = vadd.f32 %v830, %v990
        %v992 = vpop.f32.mrf.mxu0
        %993 = vmatprep.mubr.bf16.mxu0 0
        %994 = vmatmul.mubr.bf16.gmra.mxu0 %v678
        %v995 = vpop.f32.mrf.mxu0
        %v996 = vadd.f32 %v835, %v995
        %v997 = vpop.f32.mrf.mxu0
        %v998 = vpop.f32.mrf.mxu0
        %v999 = vadd.f32 %v838, %v998
        %v1000 = vpop.f32.mrf.mxu0
        %1001 = vdwg.mxu0
        %1002 = vst [vmem:[%s166] sm:$0xff] %v876
        %1003 = vst [vmem:[%s166 + $0x8] sm:$0xff] %v879
        %1004 = vst [vmem:[%s166 + $0x10] sm:$0xff] %v884
        %1005 = vst [vmem:[%s166 + $0x18] sm:$0xff] %v887
        %1006 = vst [vmem:[%s166 + $0x20] sm:$0xff] %v892
        %1007 = vst [vmem:[%s166 + $0x28] sm:$0xff] %v895
        %1008 = vst [vmem:[%s166 + $0x30] sm:$0xff] %v900
        %1009 = vst [vmem:[%s166 + $0x38] sm:$0xff] %v903
        %1010 = vst [vmem:[%s166 + $0x40] sm:$0xff] %v908
        %1011 = vst [vmem:[%s166 + $0x48] sm:$0xff] %v911
        %1012 = vst [vmem:[%s166 + $0x50] sm:$0xff] %v916
        %1013 = vst [vmem:[%s166 + $0x58] sm:$0xff] %v919
        %1014 = vst [vmem:[%s166 + $0x60] sm:$0xff] %v924
        %1015 = vst [vmem:[%s166 + $0x68] sm:$0xff] %v927
        %1016 = vst [vmem:[%s166 + $0x70] sm:$0xff] %v932
        %1017 = vst [vmem:[%s166 + $0x78] sm:$0xff] %v935
        %1018 = vst [vmem:[%s166 + $0x80] sm:$0xff] %v940
        %1019 = vst [vmem:[%s166 + $0x88] sm:$0xff] %v943
        %1020 = vst [vmem:[%s166 + $0x90] sm:$0xff] %v948
        %1021 = vst [vmem:[%s166 + $0x98] sm:$0xff] %v951
        %1022 = vst [vmem:[%s166 + $0xa0] sm:$0xff] %v956
        %1023 = vst [vmem:[%s166 + $0xa8] sm:$0xff] %v959
        %1024 = vst [vmem:[%s166 + $0xb0] sm:$0xff] %v964
        %1025 = vst [vmem:[%s166 + $0xb8] sm:$0xff] %v967
        %1026 = vst [vmem:[%s166 + $0xc0] sm:$0xff] %v972
        %1027 = vst [vmem:[%s166 + $0xc8] sm:$0xff] %v975
        %1028 = vst [vmem:[%s166 + $0xd0] sm:$0xff] %v980
        %1029 = vst [vmem:[%s166 + $0xd8] sm:$0xff] %v983
        %1030 = vst [vmem:[%s166 + $0xe0] sm:$0xff] %v988
        %1031 = vst [vmem:[%s166 + $0xe8] sm:$0xff] %v991
        %1032 = vst [vmem:[%s166 + $0xf0] sm:$0xff] %v996
        %1033 = vst [vmem:[%s166 + $0xf8] sm:$0xff] %v999
        %s1034 = sand.u32 %s93, 1
        %s1035 = scalar_lea.sflag [#allocation3], %s1034
        %s1036 = sand.u32 %s93, 1
        %s1037 = smul.addr %s1036, 256
        %s1038 = scalar_lea.vmem [#allocation2], %s1037
        // Predicated region
        $region33: #{tpu_custom_call.1} parent=31 // pred_check
          %p1039 = pneg %p103
        $region34: #{tpu_custom_call.1} parent=31 // pred_check_branch
          %1041 = sbr.rel (%p1039) target = $region36
        $region35: #{tpu_custom_call.1} parent=31 // pred_region
          %s1042 = smul.u32 32, %s17
          %s1044 = ssub.s32 4096, 4096
          %1045 = vsyncadd %s1035, %s1044
          %s1046 = smul.addr %s1042, 128
          %s1047 = scalar_lea.hbm %s3, %s1046
          %s1048 = sshll.u32 %s1038, 4
          %s1049 = int_to_ptr.vmem [resolvable:$true] %s1048
          %1054 = dma.vmem_to_hbm [thread:$0]  %s1049, 4096, %s1047, %s1035, 128, 128, 8
        $region36: #{tpu_custom_call.1} parent=31 // pred_fallthru
          _
      $region32: #{tpu_custom_call.1} parent=5 // pred_fallthru
        _
      %p1055 = scmp.le.s32.totalorder 2, %s12
      // Predicated region
      $region37: #{tpu_custom_call.1} parent=5 // pred_check
        %p1056 = pneg %p1055
      $region38: #{tpu_custom_call.1} parent=5 // pred_check_branch
        %1058 = sbr.rel (%p1056) target = $region40
      $region39: #{tpu_custom_call.1} parent=5 // pred_region
        %s1059 = ssub.s32 %s12, 2
        // Predicated region
        $region41: #{tpu_custom_call.1} parent=39 // pred_check
          %p1060 = pneg %p109
        $region42: #{tpu_custom_call.1} parent=39 // pred_check_branch
          %1062 = sbr.rel (%p1060) target = $region44
        $region43: #{tpu_custom_call.1} parent=39 // pred_region
          %s1063 = sand.u32 %s94, 1
          %s1064 = scalar_lea.sflag [#allocation3], %s1063
          %s1065 = sand.u32 %s94, 1
          %s1066 = smul.addr %s1065, 256
          %s1067 = scalar_lea.vmem [#allocation2], %s1066
          %1068 = dma.done %s1064, 4096
        $region44: #{tpu_custom_call.1} parent=39 // pred_fallthru
          _
      $region40: #{tpu_custom_call.1} parent=5 // pred_fallthru
        _
    $region6: #{tpu_custom_call.1} parent=1 // loop_footer
      %s16 = sadd.s32 1, %s12
    $region7: #{tpu_custom_call.1} parent=1 // loop_footer_branch
      %11 = sbr.rel target = $region3
    $region8: #{tpu_custom_call.1} parent=1 // loop_exit
      _
    %1069 = vsyncpa [#allocation3], 1
    %s1070 = scalar_lea.sflag [#allocation3], 1
    %1071 = vsyncpa %s1070, 1

</llo_original>
